<compile_context>
chip_gen: v7x
topology: tpu7x:2x2x1
jax: 0.10.0
libtpu: 0.0.40
codegen_flags: <defaults>
</compile_context>

<pallas_src>
import jax
import jax.numpy as jnp
from jax.experimental import pallas as pl
from jax.experimental.pallas import tpu as pltpu


def _linear_kernel(w_ref, xt_ref, b_ref, o_ref):
    # w_ref: (2, D), xt_ref: (D, tile_b), b_ref: (2, 1), o_ref: (2, tile_b)
    acc = jnp.dot(w_ref[...], xt_ref[...], preferred_element_type=jnp.float32)
    o_ref[...] = (acc + b_ref[...]).astype(o_ref.dtype)


def _pick_tile_b(B, D, dtype_bytes, *,
                 target_block_bytes=2 << 20,     # ~2 MiB input per grid step
                 vmem_budget_bytes=12 << 20):    # safe under v5e's 16 MiB scoped default
    """Pick a lane-aligned (multiple of 128) batch tile."""
    # Weight (2, D) lives in VMEM lane/sublane-padded to (8, ceil(D/128)*128),
    # x2 for double buffering; subtract it from the input-stream budget.
    d_pad = ((D + 127) // 128) * 128
    w_bytes = 2 * 8 * d_pad * dtype_bytes
    budget = max(1 << 20, vmem_budget_bytes - w_bytes)

    rows_vmem = budget // (2 * D * dtype_bytes)        # double-buffered input
    rows_target = target_block_bytes // (D * dtype_bytes)
    tile_b = max(128, min(rows_target, rows_vmem))
    tile_b = (tile_b // 128) * 128

    b_pad = ((B + 127) // 128) * 128
    tile_b = min(tile_b, b_pad)
    # Keep >=2 grid steps when possible so the "parallel" axis can shard
    # across v7x's two TensorCores (neutral on single-TC v5e/v6e).
    if tile_b >= b_pad and b_pad >= 256:
        tile_b = max(128, (b_pad // 2 // 128) * 128)
    return max(128, tile_b)


def request_slot_tracker(state, weight, bias, *, tile_b=None,
                         vmem_limit_bytes=None):
    """state: (B, D), weight: (2, D) (PyTorch layout), bias: (2,) -> (B, 2)."""
    B, D = state.shape
    out_dim = weight.shape[0]
    dtype_bytes = jnp.dtype(state.dtype).itemsize

    if tile_b is None:
        tile_b = _pick_tile_b(B, D, dtype_bytes)
    tile_b = max(128, (int(tile_b) // 128) * 128)

    b_pad = ((B + tile_b - 1) // tile_b) * tile_b

    # Transposed, lane-dense layout: (D, b_pad). Padded columns compute to
    # `bias` (zeros @ W + b) — harmless, sliced off below.
    state_t = jnp.transpose(state)
    if b_pad != B:
        state_t = jnp.pad(state_t, ((0, 0), (0, b_pad - B)))

    bias_col = bias.reshape(out_dim, 1)
    grid = (b_pad // tile_b,)

    cost = pl.CostEstimate(
        flops=2 * B * D * out_dim,
        transcendentals=0,
        bytes_accessed=(B * D + D * out_dim + B * out_dim) * dtype_bytes,
    )

    out_t = pl.pallas_call(
        _linear_kernel,
        out_shape=jax.ShapeDtypeStruct((out_dim, b_pad), state.dtype),
        grid_spec=pltpu.PrefetchScalarGridSpec(
            num_scalar_prefetch=0,
            grid=grid,
            in_specs=[
                # weight & bias: same block every step -> stay VMEM-resident
                pl.BlockSpec((out_dim, D), lambda i: (0, 0)),
                # state_t: one lane-dense batch tile per grid step
                pl.BlockSpec((D, tile_b), lambda i: (0, i)),
                pl.BlockSpec((out_dim, 1), lambda i: (0, 0)),
            ],
            out_specs=pl.BlockSpec((out_dim, tile_b), lambda i: (0, i)),
        ),
        compiler_params=pltpu.CompilerParams(
            dimension_semantics=("parallel",),
            vmem_limit_bytes=vmem_limit_bytes,
        ),
        cost_estimate=cost,
    )(weight, state_t, bias_col)

    return jnp.transpose(out_t)[:B]


def init_params(input_dim, key):
    # Deterministic init mimicking nn.Linear's uniform(-1/sqrt(fan_in), 1/sqrt(fan_in)).
    k_w, k_b = jax.random.split(key)
    bound = 1.0 / jnp.sqrt(input_dim)
    # Native PyTorch layout: weight is (2, input_dim).
    weight = jax.random.uniform(
        k_w, (2, input_dim), dtype=jnp.float32, minval=-bound, maxval=bound
    )
    bias = jax.random.uniform(
        k_b, (2,), dtype=jnp.float32, minval=-bound, maxval=bound
    )
    return weight, bias


if __name__ == "__main__":
    key = jax.random.PRNGKey(0)
    k_x, k_p, k_x2 = jax.random.split(key, 3)

    # Small shapes consistent with the module.
    batch, input_dim = 8, 32
    state = jax.random.normal(k_x, (batch, input_dim), dtype=jnp.float32)
    weight, bias = init_params(input_dim, k_p)

    out = request_slot_tracker(state, weight, bias)
    out = jax.block_until_ready(out)

    ref = state @ weight.T + bias[None, :]
    assert out.shape == (batch, 2)
    assert jnp.allclose(out, ref, atol=1e-5, rtol=1e-5)

    # Exercise the multi-step grid + batch padding path (B not a multiple of
    # the 128-row tile) to verify boundary handling and lane-dense stores.
    batch2 = 300
    state2 = jax.random.normal(k_x2, (batch2, input_dim), dtype=jnp.float32)
    out2 = request_slot_tracker(state2, weight, bias, tile_b=128)
    out2 = jax.block_until_ready(out2)
    ref2 = state2 @ weight.T + bias[None, :]
    assert out2.shape == (batch2, 2)
    assert jnp.allclose(out2, ref2, atol=1e-5, rtol=1e-5)

    print("KERNEL_OK")
</pallas_src>

<mosaic_0001>
module attributes {stable_mosaic.version = 11 : i64} {
  func.func @_linear_kernel(%arg0: i32, %arg1: memref<2x32xf32, #tpu.memory_space<vmem>>, %arg2: memref<32x128xf32, #tpu.memory_space<vmem>>, %arg3: memref<2x1xf32, #tpu.memory_space<vmem>>, %arg4: memref<2x128xf32, #tpu.memory_space<vmem>>) attributes {dimension_semantics = [#tpu.dimension_semantics<parallel>], iteration_bounds = array<i64: 1>, scalar_prefetch = 0 : i64, scratch_operands = 0 : i64, tpu.core_type = #tpu.core_type<tc>, window_params = [{pipeline_mode = #tpu.pipeline_mode<synchronous>, transform_indices = @transform_0, window_bounds = array<i64: 2, 32>}, {transform_indices = @transform_1, window_bounds = array<i64: 32, 128>}, {pipeline_mode = #tpu.pipeline_mode<synchronous>, transform_indices = @transform_2, window_bounds = array<i64: 2, 1>}, {transform_indices = @transform_3, window_bounds = array<i64: 2, 128>}]} {
    %c0 = arith.constant 0 : index
    %c0_0 = arith.constant 0 : index
    %0 = vector.load %arg1[%c0, %c0_0] : memref<2x32xf32, #tpu.memory_space<vmem>>, vector<2x32xf32>
    %c0_1 = arith.constant 0 : index
    %c0_2 = arith.constant 0 : index
    %1 = vector.load %arg2[%c0_1, %c0_2] : memref<32x128xf32, #tpu.memory_space<vmem>>, vector<32x128xf32>
    %cst = arith.constant dense<0.000000e+00> : vector<2x128xf32>
    %2 = tpu.matmul %0, %1, %cst {dimension_numbers = #tpu.dot_dimension_numbers<[1], [0], [0], [1], [0, 0, 1, 1], [], []>} : vector<2x32xf32>, vector<32x128xf32>, vector<2x128xf32> -> vector<2x128xf32>
    %c0_3 = arith.constant 0 : index
    %c0_4 = arith.constant 0 : index
    %3 = vector.load %arg3[%c0_3, %c0_4] : memref<2x1xf32, #tpu.memory_space<vmem>>, vector<2x1xf32>
    %4 = vector.broadcast %3 : vector<2x1xf32> to vector<2x128xf32>
    %5 = arith.addf %2, %4 : vector<2x128xf32>
    %c0_5 = arith.constant 0 : index
    %c0_6 = arith.constant 0 : index
    %6 = vector.load %arg4[%c0_5, %c0_6] : memref<2x128xf32, #tpu.memory_space<vmem>>, vector<2x128xf32>
    tpu.vector_store %arg4[%c0_5, %c0_6], %5 {strides = array<i32>} : memref<2x128xf32, #tpu.memory_space<vmem>>, vector<2x128xf32>,
    return
  }
  func.func @transform_0(%arg0: i32) -> (i32, i32) {
    %c0_i32 = arith.constant 0 : i32
    %c0_i32_0 = arith.constant 0 : i32
    %c0_i32_1 = arith.constant 0 : i32
    return %c0_i32, %c0_i32_0 : i32, i32
  }
  func.func @transform_1(%arg0: i32) -> (i32, i32) {
    %c0_i32 = arith.constant 0 : i32
    %c0_i32_0 = arith.constant 0 : i32
    return %c0_i32, %arg0 : i32, i32
  }
  func.func @transform_2(%arg0: i32) -> (i32, i32) {
    %c0_i32 = arith.constant 0 : i32
    %c0_i32_0 = arith.constant 0 : i32
    %c0_i32_1 = arith.constant 0 : i32
    return %c0_i32, %c0_i32_0 : i32, i32
  }
  func.func @transform_3(%arg0: i32) -> (i32, i32) {
    %c0_i32 = arith.constant 0 : i32
    %c0_i32_0 = arith.constant 0 : i32
    return %c0_i32, %arg0 : i32, i32
  }
}

</mosaic_0001>

<llo_original>
// kernel: tpu_custom_call.1
$region0: #{tpu_custom_call.1}
  #allocation0 [shape = 'u32[]', space=smem, size = 0x4, offset = 0x4, fixed_abs, tag = 'smem constant byte address 0x4 - core index']
  #allocation1 [shape = 'u32[144,128]{1,0:T(1,128)}', space=vmem, size = 0x12000, scoped, tag = 'internal scratch']
  %s0 = inlined_call_operand.vmem [shape: f32[2,32], index: 0, kind: input, shape index: {}]
  %s1 = inlined_call_operand.hbm [shape: f32[32,128], index: 1, kind: input, shape index: {}]
  %s2 = inlined_call_operand.vmem [shape: f32[2,1], index: 2, kind: input, shape index: {}]
  %s3 = inlined_call_operand.hbm [shape: f32[2,128], index: 3, kind: output, shape index: {}]
  %s4 = sld [smem:[#allocation0]]
  $region26: #{tpu_custom_call.1} parent=0
    _
  %s6 = ssub.s32 1, %s4
  %s7 = scalar_select 0, %s6, %s4
  $region1: #{tpu_custom_call.1} parent=0
    #allocation2 [shape = 'u8[16384]{0}', space=vmem, size = 0x4000, scoped, tag = 'input window, operand 1, single buffered']
    #allocation3 [shape = 's32[1]{0}', space=sflag, size = 0x4, scoped, tag = 'scoped memory for tpu_custom_call.1']
    #allocation4 [shape = 's32[1]{0}', space=sflag, size = 0x4, scoped, tag = 'scoped memory for tpu_custom_call.1']
    #allocation5 [shape = 'u8[1024]{0}', space=vmem, size = 0x400, scoped, tag = 'output window, operand 0, single buffered']
    %8 = vsyncpa [#allocation3], 0
    %9 = vsyncpa [#allocation4], 0
    // Predicated region
    $region2: #{tpu_custom_call.1} parent=1 // pred_check
      _
    $region3: #{tpu_custom_call.1} parent=1 // pred_check_branch
      %11 = sbr.rel (0) target = $region5
    $region4: #{tpu_custom_call.1} parent=1 // pred_region
      _
    $region5: #{tpu_custom_call.1} parent=1 // pred_fallthru
      _
    // Predicated region
    $region6: #{tpu_custom_call.1} parent=1 // pred_check
      _
    $region7: #{tpu_custom_call.1} parent=1 // pred_check_branch
      %13 = sbr.rel (0) target = $region9
    $region8: #{tpu_custom_call.1} parent=1 // pred_region
      %s15 = ssub.s32 512, 512
      %16 = vsyncadd [#allocation3], %s15
      %s17 = sshll.u32 [#allocation2], 4
      %s18 = int_to_ptr.vmem [resolvable:$true] %s17
      %23 = dma.hbm_to_vmem [thread:$0]  %s1, 512, %s18, [#allocation3], 128, 128, 8
    $region9: #{tpu_custom_call.1} parent=1 // pred_fallthru
      _
    // Predicated region
    $region10: #{tpu_custom_call.1} parent=1 // pred_check
      _
    $region11: #{tpu_custom_call.1} parent=1 // pred_check_branch
      %25 = sbr.rel (0) target = $region13
    $region12: #{tpu_custom_call.1} parent=1 // pred_region
      _
    $region13: #{tpu_custom_call.1} parent=1 // pred_fallthru
      _
    // Predicated region
    $region14: #{tpu_custom_call.1} parent=1 // pred_check
      _
    $region15: #{tpu_custom_call.1} parent=1 // pred_check_branch
      %27 = sbr.rel (0) target = $region17
    $region16: #{tpu_custom_call.1} parent=1 // pred_region
      %28 = dma.done [#allocation3], 512
    $region17: #{tpu_custom_call.1} parent=1 // pred_fallthru
      _
    %v29 = vld [vmem:[%s0] sm:$0x3]
    %v30 = vld [vmem:[#allocation2] sm:$0xff]
    %v31 = vld [vmem:[#allocation2 + $0x8] sm:$0xff]
    %v32 = vld [vmem:[#allocation2 + $0x10] sm:$0xff]
    %v33 = vld [vmem:[#allocation2 + $0x18] sm:$0xff]
    %v34 = vld [vmem:[%s2] sm:$0x3]
    %36 = vset.pattern.permute.xlu0 0
    %37 = vperm.xlu0 %36, %v34
    %v38 = vpop.permute.xlu0 %37
    %vm40 = vcmask 261120
    %v42 = vsel %vm40, %v29, 0
    %44 = vmatprep.subr.mxu0 0.0
    %45 = vmatpush1.msra.mxu0 %v30
    %46 = vmatprep.subr.mxu0 0.0
    %47 = vmatpush1.msra.mxu0 %v31
    %48 = vmatprep.subr.mxu0 0.0
    %49 = vmatpush1.msra.mxu0 %v32
    %50 = vmatprep.subr.mxu0 0.0
    %51 = vmatpush1.msra.mxu0 %v33
    %52 = vmatprep.subr.mxu0 0.0
    %53 = vmatpush1.msra.mxu0 0.0
    %54 = vmatprep.subr.mxu0 0.0
    %55 = vmatpush1.msra.mxu0 0.0
    %56 = vmatprep.subr.mxu0 0.0
    %57 = vmatpush1.msra.mxu0 0.0
    %58 = vmatprep.subr.mxu0 0.0
    %59 = vmatpush1.msra.mxu0 0.0
    %60 = vmatprep.subr.mxu0 0.0
    %61 = vmatpush1.msra.mxu0 0.0
    %62 = vmatprep.subr.mxu0 0.0
    %63 = vmatpush1.msra.mxu0 0.0
    %64 = vmatprep.subr.mxu0 0.0
    %65 = vmatpush1.msra.mxu0 0.0
    %66 = vmatprep.subr.mxu0 0.0
    %67 = vmatpush1.msra.mxu0 0.0
    %68 = vmatprep.subr.mxu0 0.0
    %69 = vmatpush1.msra.mxu0 0.0
    %70 = vmatprep.subr.mxu0 0.0
    %71 = vmatpush1.msra.mxu0 0.0
    %72 = vmatprep.subr.mxu0 0.0
    %73 = vmatpush1.msra.mxu0 0.0
    %74 = vmatprep.subr.mxu0 0.0
    %75 = vmatpush1.msra.mxu0 0.0
    %76 = vmatprep.subr.mxu0 0.0
    %77 = vmatpush1.msra.mxu0 0.0
    %78 = vmatprep.subr.mxu0 0.0
    %79 = vmatpush1.msra.mxu0 0.0
    %80 = vmatprep.subr.mxu0 0.0
    %81 = vmatpush1.msra.mxu0 0.0
    %82 = vmatprep.subr.mxu0 0.0
    %83 = vmatpush1.msra.mxu0 0.0
    %84 = vmatprep.subr.mxu0 0.0
    %85 = vmatpush1.msra.mxu0 0.0
    %86 = vmatprep.subr.mxu0 0.0
    %87 = vmatpush1.msra.mxu0 0.0
    %88 = vmatprep.subr.mxu0 0.0
    %89 = vmatpush1.msra.mxu0 0.0
    %90 = vmatprep.subr.mxu0 0.0
    %91 = vmatpush1.msra.mxu0 0.0
    %92 = vmatprep.subr.mxu0 0.0
    %93 = vmatpush1.msra.mxu0 0.0
    %94 = vmatprep.subr.mxu0 0.0
    %95 = vmatpush1.msra.mxu0 0.0
    %96 = vmatprep.subr.mxu0 0.0
    %97 = vmatpush1.msra.mxu0 0.0
    %98 = vmatprep.subr.mxu0 0.0
    %99 = vmatpush1.msra.mxu0 0.0
    %100 = vmatprep.subr.mxu0 0.0
    %101 = vmatpush1.msra.mxu0 0.0
    %102 = vmatprep.subr.mxu0 0.0
    %103 = vmatpush1.msra.mxu0 0.0
    %104 = vmatprep.subr.mxu0 0.0
    %105 = vmatpush1.msra.mxu0 0.0
    %106 = vmatprep.subr.mxu0 0.0
    %107 = vmatpush1.msra.mxu0 0.0
    %108 = vmatprep.mubr.f32.mxu0 0.0
    %109 = vmatmul.mubr.f32.gmra.mrb[0].mxu0 %v42
    %v110 = vpop.f32.mrb[0].mxu0
    %v111 = vadd.f32 %v38, %v110
    %v112 = vpop.f32.mrb[0].mxu0
    %113 = vdwg.mxu0
    %114 = vst [vmem:[#allocation5] sm:$0x3] %v111
    // Predicated region
    $region18: #{tpu_custom_call.1} parent=1 // pred_check
      _
    $region19: #{tpu_custom_call.1} parent=1 // pred_check_branch
      %116 = sbr.rel (0) target = $region21
    $region20: #{tpu_custom_call.1} parent=1 // pred_region
      %s118 = ssub.s32 32, 32
      %119 = vsyncadd [#allocation4], %s118
      %s121 = sshll.u32 [#allocation5], 4
      %s122 = int_to_ptr.vmem [resolvable:$true] %s121
      %124 = dma.vmem_to_hbm [thread:$0]  %s122, 32, %s3, [#allocation4]
    $region21: #{tpu_custom_call.1} parent=1 // pred_fallthru
      _
    // Predicated region
    $region22: #{tpu_custom_call.1} parent=1 // pred_check
      _
    $region23: #{tpu_custom_call.1} parent=1 // pred_check_branch
      %126 = sbr.rel (0) target = $region25
    $region24: #{tpu_custom_call.1} parent=1 // pred_region
      %127 = dma.done [#allocation4], 32
    $region25: #{tpu_custom_call.1} parent=1 // pred_fallthru
      _
    %128 = vsyncpa [#allocation3], 1
    %129 = vsyncpa [#allocation4], 1

</llo_original>
